<compile_context>
chip_gen: v6e
topology: v6e:2x2x1
jax: 0.10.0
libtpu: 0.0.40
codegen_flags: <defaults>
</compile_context>

<pallas_src>
import functools

import jax
import jax.numpy as jnp
from jax.experimental import pallas as pl
from jax.experimental.pallas import tpu as pltpu


MAX_LANE_BLOCK = 64 * 1024  # lanes per grid step at large B (multiple of 128)

# Packed-parameter slab, shape [16, 8] f32:
#   cols 0..3 : W1          (PyTorch layout [out=16, in=4])
#   col  4    : b1          ([16])
#   col  5    : W2[0, :]    (class-0 weights, as a column over hidden units)
#   col  6    : W2[1, :]    (class-1 weights)
#   col  7    : [b2[0], b2[1], 0, ...]


def policy_kernel(x_ref, p_ref, out_ref):
    # x_ref:   [4, L]    features x batch (batch on lanes)
    # p_ref:   [16, 8]   packed parameters (resident in VMEM across the grid)
    # out_ref: [2, L]    softmax probabilities (classes x batch)

    # ---- Linear(4 -> 16) + ReLU: 4 broadcast FMAs on the VPU ----
    h = p_ref[:, 4:5]                                  # bias column [16, 1]
    for k in range(4):                                 # static unroll over inputs
        h = h + p_ref[:, k:k + 1] * x_ref[k:k + 1, :]  # [16,1]*[1,L] -> [16,L]
    h = jnp.maximum(h, 0.0)                            # [16, L]

    # ---- Linear(16 -> 2) + softmax(dim=1), 2-class sigmoid form ----
    wd = p_ref[:, 5:6] - p_ref[:, 6:7]                 # [16, 1] = W2[0,:] - W2[1,:]
    bd = p_ref[0:1, 7:8] - p_ref[1:2, 7:8]             # [1, 1]  = b2[0]  - b2[1]
    d = jnp.sum(wd * h, axis=0, keepdims=True) + bd    # [1, L] logit difference
    # sigmoid(d) == softmax(logits)[:, 0]; tanh form keeps it on the EUP.
    p0 = 0.5 * (jnp.tanh(0.5 * d) + 1.0)
    out_ref[0:1, :] = p0
    out_ref[1:2, :] = 1.0 - p0


def pack_params(w1, b1, w2, b2):
    """Pack PyTorch-layout params (w: [out,in], b: [out]) into one [16, 8] slab."""
    slab = jnp.zeros((16, 8), jnp.float32)
    slab = slab.at[:, 0:4].set(w1.astype(jnp.float32))
    slab = slab.at[:, 4].set(b1.astype(jnp.float32))
    slab = slab.at[:, 5].set(w2[0, :].astype(jnp.float32))
    slab = slab.at[:, 6].set(w2[1, :].astype(jnp.float32))
    slab = slab.at[0, 7].set(b2[0].astype(jnp.float32))
    slab = slab.at[1, 7].set(b2[1].astype(jnp.float32))
    return slab


def _round_up(n, m):
    return (n + m - 1) // m * m


def policy_forward(x, params_slab, *, max_lanes=MAX_LANE_BLOCK):
    """x: [B, 4] float32 -> softmax probs [B, 2] (matches Policy.forward)."""
    B = x.shape[0]
    # Adaptive lane block: as big as the batch (rounded to 128), capped so a
    # double-buffered (x + out) pair stays at a few MiB even on v7x's 32 MiB
    # scoped VMEM default.  Large B => multiple "parallel" grid steps (2 TCs).
    b128 = _round_up(max(B, 1), 128)
    lane_block = min(b128, max_lanes)
    b_pad = _round_up(b128, lane_block)
    num_blocks = b_pad // lane_block

    # Fused transpose + tail-pad (no full zero-slab materialization).
    x_t = jnp.pad(x.T.astype(jnp.float32), ((0, 0), (0, b_pad - B)))

    cost = pl.CostEstimate(
        flops=b_pad * (2 * 4 * 16 + 16 + 2 * 16 + 6),
        transcendentals=b_pad,
        bytes_accessed=4 * (4 * b_pad + 16 * 8 + 2 * b_pad),
    )

    out_t = pl.pallas_call(
        policy_kernel,
        out_shape=jax.ShapeDtypeStruct((2, b_pad), jnp.float32),
        grid=(num_blocks,),
        in_specs=[
            # x^T, lane-blocked; each of the 4 rows is a contiguous segment.
            pl.BlockSpec((4, lane_block), lambda i: (0, i)),
            # Packed params: constant block index -> DMA'd once, stays in VMEM.
            pl.BlockSpec((16, 8), lambda i: (0, 0)),
        ],
        out_specs=pl.BlockSpec((2, lane_block), lambda i: (0, i)),
        compiler_params=pltpu.CompilerParams(
            dimension_semantics=("parallel",),  # shards batch across TCs on v7x
        ),
        cost_estimate=cost,
    )(x_t, params_slab)

    return out_t[:, :B].T                                      # back to [B, 2]


def init_params(key):
    # nn.Linear default init: U(-1/sqrt(fan_in), +1/sqrt(fan_in)); PyTorch layout.
    k1, k2, k3, k4 = jax.random.split(key, 4)
    bound1 = 1.0 / jnp.sqrt(4.0)
    bound2 = 1.0 / jnp.sqrt(16.0)
    w1 = jax.random.uniform(k1, (16, 4), jnp.float32, -bound1, bound1)
    b1 = jax.random.uniform(k2, (16,), jnp.float32, -bound1, bound1)
    w2 = jax.random.uniform(k3, (2, 16), jnp.float32, -bound2, bound2)
    b2 = jax.random.uniform(k4, (2,), jnp.float32, -bound2, bound2)
    return w1, b1, w2, b2


def reference_forward(x, w1, b1, w2, b2):
    h = jnp.maximum(x @ w1.T + b1, 0.0)
    logits = h @ w2.T + b2
    return jax.nn.softmax(logits, axis=1)


if __name__ == "__main__":
    key = jax.random.PRNGKey(0)
    kp, kx, kx2 = jax.random.split(key, 3)

    w1, b1, w2, b2 = init_params(kp)
    slab = pack_params(w1, b1, w2, b2)

    # --- Small batch (CartPole obs = 4 features, batch = 8): single block. ---
    x = jax.random.normal(kx, (8, 4), jnp.float32)
    fwd = jax.jit(policy_forward)
    out = jax.block_until_ready(fwd(x, slab))
    ref = reference_forward(x, w1, b1, w2, b2)
    assert out.shape == (8, 2)
    assert jnp.allclose(jnp.sum(out, axis=1), 1.0, atol=1e-5)
    assert jnp.allclose(out, ref, atol=1e-5, rtol=1e-5)

    # --- Multi-grid-step + partial-tail-padding path (cap lanes at 256). ---
    x_big = jax.random.normal(kx2, (600, 4), jnp.float32)
    fwd_multi = jax.jit(functools.partial(policy_forward, max_lanes=256))
    out_big = jax.block_until_ready(fwd_multi(x_big, slab))
    ref_big = reference_forward(x_big, w1, b1, w2, b2)
    assert out_big.shape == (600, 2)
    assert jnp.allclose(jnp.sum(out_big, axis=1), 1.0, atol=1e-5)
    assert jnp.allclose(out_big, ref_big, atol=1e-5, rtol=1e-5)

    print("KERNEL_OK")
</pallas_src>

<mosaic_0001>
module attributes {stable_mosaic.version = 11 : i64} {
  func.func @policy_kernel(%arg0: i32, %arg1: memref<4x128xf32, #tpu.memory_space<vmem>>, %arg2: memref<16x8xf32, #tpu.memory_space<vmem>>, %arg3: memref<2x128xf32, #tpu.memory_space<vmem>>) attributes {dimension_semantics = [#tpu.dimension_semantics<parallel>], iteration_bounds = array<i64: 1>, scalar_prefetch = 0 : i64, scratch_operands = 0 : i64, tpu.core_type = #tpu.core_type<tc>, window_params = [{transform_indices = @transform_0, window_bounds = array<i64: 4, 128>}, {pipeline_mode = #tpu.pipeline_mode<synchronous>, transform_indices = @transform_1, window_bounds = array<i64: 16, 8>}, {transform_indices = @transform_2, window_bounds = array<i64: 2, 128>}]} {
    %c0 = arith.constant 0 : index
    %c4 = arith.constant 4 : index
    %0 = vector.load %arg2[%c0, %c4] : memref<16x8xf32, #tpu.memory_space<vmem>>, vector<16x1xf32>
    %c0_0 = arith.constant 0 : index
    %c0_1 = arith.constant 0 : index
    %1 = vector.load %arg2[%c0_0, %c0_1] : memref<16x8xf32, #tpu.memory_space<vmem>>, vector<16x1xf32>
    %c0_2 = arith.constant 0 : index
    %c0_3 = arith.constant 0 : index
    %2 = vector.load %arg1[%c0_2, %c0_3] : memref<4x128xf32, #tpu.memory_space<vmem>>, vector<1x128xf32>
    %3 = vector.broadcast %1 : vector<16x1xf32> to vector<16x128xf32>
    %4 = vector.broadcast %2 : vector<1x128xf32> to vector<16x128xf32>
    %5 = arith.mulf %3, %4 : vector<16x128xf32>
    %6 = vector.broadcast %0 : vector<16x1xf32> to vector<16x128xf32>
    %7 = arith.addf %6, %5 : vector<16x128xf32>
    %c0_4 = arith.constant 0 : index
    %c1 = arith.constant 1 : index
    %8 = vector.load %arg2[%c0_4, %c1] : memref<16x8xf32, #tpu.memory_space<vmem>>, vector<16x1xf32>
    %c1_5 = arith.constant 1 : index
    %c0_6 = arith.constant 0 : index
    %9 = vector.load %arg1[%c1_5, %c0_6] : memref<4x128xf32, #tpu.memory_space<vmem>>, vector<1x128xf32>
    %10 = vector.broadcast %8 : vector<16x1xf32> to vector<16x128xf32>
    %11 = vector.broadcast %9 : vector<1x128xf32> to vector<16x128xf32>
    %12 = arith.mulf %10, %11 : vector<16x128xf32>
    %13 = arith.addf %7, %12 : vector<16x128xf32>
    %c0_7 = arith.constant 0 : index
    %c2 = arith.constant 2 : index
    %14 = vector.load %arg2[%c0_7, %c2] : memref<16x8xf32, #tpu.memory_space<vmem>>, vector<16x1xf32>
    %c2_8 = arith.constant 2 : index
    %c0_9 = arith.constant 0 : index
    %15 = vector.load %arg1[%c2_8, %c0_9] : memref<4x128xf32, #tpu.memory_space<vmem>>, vector<1x128xf32>
    %16 = vector.broadcast %14 : vector<16x1xf32> to vector<16x128xf32>
    %17 = vector.broadcast %15 : vector<1x128xf32> to vector<16x128xf32>
    %18 = arith.mulf %16, %17 : vector<16x128xf32>
    %19 = arith.addf %13, %18 : vector<16x128xf32>
    %c0_10 = arith.constant 0 : index
    %c3 = arith.constant 3 : index
    %20 = vector.load %arg2[%c0_10, %c3] : memref<16x8xf32, #tpu.memory_space<vmem>>, vector<16x1xf32>
    %c3_11 = arith.constant 3 : index
    %c0_12 = arith.constant 0 : index
    %21 = vector.load %arg1[%c3_11, %c0_12] : memref<4x128xf32, #tpu.memory_space<vmem>>, vector<1x128xf32>
    %22 = vector.broadcast %20 : vector<16x1xf32> to vector<16x128xf32>
    %23 = vector.broadcast %21 : vector<1x128xf32> to vector<16x128xf32>
    %24 = arith.mulf %22, %23 : vector<16x128xf32>
    %25 = arith.addf %19, %24 : vector<16x128xf32>
    %cst = arith.constant 0.000000e+00 : f32
    %26 = vector.broadcast %cst : f32 to vector<16x128xf32>
    %27 = arith.maximumf %25, %26 : vector<16x128xf32>
    %c0_13 = arith.constant 0 : index
    %c5 = arith.constant 5 : index
    %28 = vector.load %arg2[%c0_13, %c5] : memref<16x8xf32, #tpu.memory_space<vmem>>, vector<16x1xf32>
    %c0_14 = arith.constant 0 : index
    %c6 = arith.constant 6 : index
    %29 = vector.load %arg2[%c0_14, %c6] : memref<16x8xf32, #tpu.memory_space<vmem>>, vector<16x1xf32>
    %30 = arith.subf %28, %29 : vector<16x1xf32>
    %c0_15 = arith.constant 0 : index
    %c7 = arith.constant 7 : index
    %31 = vector.load %arg2[%c0_15, %c7] : memref<16x8xf32, #tpu.memory_space<vmem>>, vector<1x1xf32>
    %c1_16 = arith.constant 1 : index
    %c7_17 = arith.constant 7 : index
    %32 = vector.load %arg2[%c1_16, %c7_17] : memref<16x8xf32, #tpu.memory_space<vmem>>, vector<1x1xf32>
    %33 = arith.subf %31, %32 : vector<1x1xf32>
    %34 = vector.broadcast %30 : vector<16x1xf32> to vector<16x128xf32>
    %35 = arith.mulf %34, %27 : vector<16x128xf32>
    %cst_18 = arith.constant dense<0.000000e+00> : vector<128xf32>
    %36 = vector.multi_reduction <add>, %35, %cst_18 [0] : vector<16x128xf32> to vector<128xf32>
    %37 = vector.shape_cast %36 : vector<128xf32> to vector<1x128xf32>
    %38 = vector.broadcast %33 : vector<1x1xf32> to vector<1x128xf32>
    %39 = arith.addf %37, %38 : vector<1x128xf32>
    %cst_19 = arith.constant 5.000000e-01 : f32
    %40 = vector.broadcast %cst_19 : f32 to vector<1x128xf32>
    %41 = arith.mulf %40, %39 : vector<1x128xf32>
    %42 = math.tanh %41 : vector<1x128xf32>
    %cst_20 = arith.constant 1.000000e+00 : f32
    %43 = vector.broadcast %cst_20 : f32 to vector<1x128xf32>
    %44 = arith.addf %42, %43 : vector<1x128xf32>
    %cst_21 = arith.constant 5.000000e-01 : f32
    %45 = vector.broadcast %cst_21 : f32 to vector<1x128xf32>
    %46 = arith.mulf %45, %44 : vector<1x128xf32>
    %c0_22 = arith.constant 0 : index
    %c0_23 = arith.constant 0 : index
    %47 = vector.load %arg3[%c0_22, %c0_23] : memref<2x128xf32, #tpu.memory_space<vmem>>, vector<1x128xf32>
    tpu.vector_store %arg3[%c0_22, %c0_23], %46 {strides = array<i32>} : memref<2x128xf32, #tpu.memory_space<vmem>>, vector<1x128xf32>,
    %cst_24 = arith.constant 1.000000e+00 : f32
    %48 = vector.broadcast %cst_24 : f32 to vector<1x128xf32>
    %49 = arith.subf %48, %46 : vector<1x128xf32>
    %c1_25 = arith.constant 1 : index
    %c0_26 = arith.constant 0 : index
    %50 = vector.load %arg3[%c1_25, %c0_26] : memref<2x128xf32, #tpu.memory_space<vmem>>, vector<1x128xf32>
    tpu.vector_store %arg3[%c1_25, %c0_26], %49 {strides = array<i32>} : memref<2x128xf32, #tpu.memory_space<vmem>>, vector<1x128xf32>,
    return
  }
  func.func @transform_0(%arg0: i32) -> (i32, i32) {
    %c0_i32 = arith.constant 0 : i32
    %c0_i32_0 = arith.constant 0 : i32
    return %c0_i32, %arg0 : i32, i32
  }
  func.func @transform_1(%arg0: i32) -> (i32, i32) {
    %c0_i32 = arith.constant 0 : i32
    %c0_i32_0 = arith.constant 0 : i32
    %c0_i32_1 = arith.constant 0 : i32
    return %c0_i32, %c0_i32_0 : i32, i32
  }
  func.func @transform_2(%arg0: i32) -> (i32, i32) {
    %c0_i32 = arith.constant 0 : i32
    %c0_i32_0 = arith.constant 0 : i32
    return %c0_i32, %arg0 : i32, i32
  }
}

</mosaic_0001>

<llo_original>
// kernel: policy_forward.1
$region0: #{policy_forward.1}
  #allocation0 [shape = 'u32[]', space=smem, size = 0x4, offset = 0x4, fixed_abs, tag = 'smem constant byte address 0x4 - core index']
  #allocation1 [shape = 'u32[144,128]{1,0:T(1,128)}', space=vmem, size = 0x12000, scoped, tag = 'internal scratch']
  %s0 = inlined_call_operand.vmem [shape: f32[4,128], index: 0, kind: input, shape index: {}]
  %s1 = inlined_call_operand.vmem [shape: f32[16,8], index: 1, kind: input, shape index: {}]
  %s2 = inlined_call_operand.vmem [shape: f32[2,128], index: 2, kind: output, shape index: {}]
  %s3 = sld [smem:[#allocation0]]
  $region18: #{policy_forward.1} parent=0
    _
  %s5 = ssub.s32 1, %s3
  %s6 = scalar_select 0, %s5, %s3
  // Predicated region
  $region2: #{policy_forward.1} parent=0 // pred_check
    _
  $region3: #{policy_forward.1} parent=0 // pred_check_branch
    %8 = sbr.rel (0) target = $region5
  $region4: #{policy_forward.1} parent=0 // pred_region
    _
  $region5: #{policy_forward.1} parent=0 // pred_fallthru
    _
  // Predicated region
  $region6: #{policy_forward.1} parent=0 // pred_check
    _
  $region7: #{policy_forward.1} parent=0 // pred_check_branch
    %10 = sbr.rel (0) target = $region9
  $region8: #{policy_forward.1} parent=0 // pred_region
    _
  $region9: #{policy_forward.1} parent=0 // pred_fallthru
    _
  %v11 = vld [vmem:[%s1] sm:$0xff]
  %v12 = vld [vmem:[%s1 + $0x8] sm:$0xff]
  %v13 = vld [vmem:[%s0] sm:$0x1]
  %15 = vset.pattern.permute.xlu0 0
  %16 = vperm.xlu0 %15, %v11
  %v17 = vpop.permute.xlu0 %16
  %20 = vset.pattern.permute.xlu0 0
  %21 = vperm.xlu0 %20, %v12
  %v22 = vpop.permute.xlu0 %21
  %v24 = vlaneseq
  %v25 = vshrl.u32 %v24, 7
  %v26 = vsub.s32 0, %v25
  %v27 = vrot.slane %v13, %v26
  %v28 = vmul.f32 %v17, %v27
  %v29 = vmul.f32 %v22, %v27
  %30 = vset.pattern.permute.xlu0 4
  %31 = vperm.xlu0 %30, %v11
  %v32 = vpop.permute.xlu0 %31
  %34 = vset.pattern.permute.xlu0 4
  %35 = vperm.xlu0 %34, %v12
  %v36 = vpop.permute.xlu0 %35
  %v38 = vadd.f32 %v32, %v28
  %v39 = vadd.f32 %v36, %v29
  %v40 = vld [vmem:[%s0 + $0x1] sm:$0x1]
  %41 = vset.pattern.permute.xlu0 1
  %42 = vperm.xlu0 %41, %v11
  %v43 = vpop.permute.xlu0 %42
  %45 = vset.pattern.permute.xlu0 1
  %46 = vperm.xlu0 %45, %v12
  %v47 = vpop.permute.xlu0 %46
  %v49 = vlaneseq
  %v50 = vshrl.u32 %v49, 7
  %v51 = vsub.s32 0, %v50
  %v52 = vrot.slane %v40, %v51
  %v53 = vmul.f32 %v43, %v52
  %v54 = vmul.f32 %v47, %v52
  %v55 = vadd.f32 %v38, %v53
  %v56 = vadd.f32 %v39, %v54
  %v57 = vld [vmem:[%s0 + $0x2] sm:$0x1]
  %58 = vset.pattern.permute.xlu0 2
  %59 = vperm.xlu0 %58, %v11
  %v60 = vpop.permute.xlu0 %59
  %62 = vset.pattern.permute.xlu0 2
  %63 = vperm.xlu0 %62, %v12
  %v64 = vpop.permute.xlu0 %63
  %v66 = vlaneseq
  %v67 = vshrl.u32 %v66, 7
  %v68 = vsub.s32 0, %v67
  %v69 = vrot.slane %v57, %v68
  %v70 = vmul.f32 %v60, %v69
  %v71 = vmul.f32 %v64, %v69
  %v72 = vadd.f32 %v55, %v70
  %v73 = vadd.f32 %v56, %v71
  %v74 = vld [vmem:[%s0 + $0x3] sm:$0x1]
  %75 = vset.pattern.permute.xlu0 3
  %76 = vperm.xlu0 %75, %v11
  %v77 = vpop.permute.xlu0 %76
  %79 = vset.pattern.permute.xlu0 3
  %80 = vperm.xlu0 %79, %v12
  %v81 = vpop.permute.xlu0 %80
  %v83 = vlaneseq
  %v84 = vshrl.u32 %v83, 7
  %v85 = vsub.s32 0, %v84
  %v86 = vrot.slane %v74, %v85
  %v87 = vmul.f32 %v77, %v86
  %v88 = vmul.f32 %v81, %v86
  %v89 = vadd.f32 %v72, %v87
  %v90 = vadd.f32 %v73, %v88
  %v91 = vmax.f32 %v89, 0.0
  %v92 = vmax.f32 %v90, 0.0
  %93 = vrot.lane.b32.xlu0 %v11, 127
  %v94 = vpop.permute.xlu0 %93
  %95 = vrot.lane.b32.xlu0 %v12, 127
  %v96 = vpop.permute.xlu0 %95
  %v99 = vsub.f32 %v11, %v94
  %v100 = vsub.f32 %v12, %v96
  %v101 = vld [vmem:[%s1] sm:$0x1]
  %v102 = vld [vmem:[%s1 + $0x1] sm:$0x1]
  %v103 = vsub.f32 %v101, %v102
  %105 = vset.pattern.permute.xlu0 5
  %106 = vperm.xlu0 %105, %v99
  %v107 = vpop.permute.xlu0 %106
  %110 = vset.pattern.permute.xlu0 5
  %111 = vperm.xlu0 %110, %v100
  %v112 = vpop.permute.xlu0 %111
  %v114 = vmul.f32 %v107, %v91
  %v115 = vmul.f32 %v112, %v92
  %v116 = vadd.f32 %v114, %v115
  %v117 = vrot.slane %v116, 4
  %v118 = vadd.f32 %v116, %v117
  %v119 = vrot.slane %v118, 2
  %v120 = vadd.f32 %v118, %v119
  %v121 = vrot.slane %v120, 1
  %v122 = vadd.f32 %v120, %v121
  %124 = vset.pattern.permute.xlu0 7
  %125 = vperm.xlu0 %124, %v103
  %v126 = vpop.permute.xlu0 %125
  %v128 = vadd.f32 %v122, %v126
  %v129 = vmul.f32 %v128, 0.5
  %v130 = vtanh.pop %v129
  %v131 = vadd.f32 %v130, 1.0
  %v132 = vmul.f32 %v131, 0.5
  %133 = vst [vmem:[%s2] sm:$0x1] %v132
  %v134 = vsub.f32 1.0, %v132
  %135 = vst [vmem:[%s2 + $0x1] sm:$0x1] %v134
  // Predicated region
  $region10: #{policy_forward.1} parent=0 // pred_check
    _
  $region11: #{policy_forward.1} parent=0 // pred_check_branch
    %137 = sbr.rel (0) target = $region13
  $region12: #{policy_forward.1} parent=0 // pred_region
    _
  $region13: #{policy_forward.1} parent=0 // pred_fallthru
    _
  // Predicated region
  $region14: #{policy_forward.1} parent=0 // pred_check
    _
  $region15: #{policy_forward.1} parent=0 // pred_check_branch
    %139 = sbr.rel (0) target = $region17
  $region16: #{policy_forward.1} parent=0 // pred_region
    _
  $region17: #{policy_forward.1} parent=0 // pred_fallthru
    _

</llo_original>
